<compile_context>
chip_gen: v5e
topology: v5e:2x2
jax: 0.10.0
libtpu: 0.0.40
codegen_flags: <defaults>
</compile_context>

<pallas_src>
import jax
import jax.numpy as jnp
from jax.experimental import pallas as pl
from jax.experimental.pallas import tpu as pltpu


# ----------------------------------------------------------------------------
# Pallas kernel: fused 1x1-conv (matmul, BN-scale folded) + bias + ReLU
# ----------------------------------------------------------------------------
def _reduce_block_kernel(x_ref, w_ref, b_ref, o_ref):
    # x_ref: (TP, P*C_in)  bf16 packed pixels
    # w_ref: (P*C_in, P*C_out) bf16 block-diagonal, BN-scale folded in
    # b_ref: (1, P*C_out)  f32 folded BN bias (tiled P times)
    y = jnp.dot(x_ref[...], w_ref[...], preferred_element_type=jnp.float32)
    o_ref[...] = jnp.maximum(y + b_ref[...], 0.0).astype(o_ref.dtype)


def reduce_block_pallas(x_nhwc, conv_w, bn_gamma, bn_beta, bn_mean, bn_var,
                        eps=1e-5, row_tile=512):
    """BasicBlock2D (1x1 conv + BN(eval) + ReLU) via Pallas, NHWC in/out.

    x_nhwc : (N, H, W, C_in) float32
    conv_w : (C_out, C_in, 1, 1) float32  (PyTorch conv weight layout)
    returns: (N, H, W, C_out) float32
    """
    N, H, W, C_in = x_nhwc.shape
    C_out = conv_w.shape[0]

    # Fold eval-mode BatchNorm into the weight (scale) and a bias vector.
    inv_std = 1.0 / jnp.sqrt(bn_var + eps)
    scale = bn_gamma * inv_std                       # (C_out,)
    bias = bn_beta - bn_mean * scale                 # (C_out,)
    w = conv_w.reshape(C_out, C_in).T * scale[None, :]   # (C_in, C_out) f32

    # Lane-dense packing: put P pixels per output row so the store width is a
    # full 128 lanes (unmasked vst) instead of a 32-lane masked store.  The
    # packed matmul uses a block-diagonal weight; MXU waste is free here
    # (kernel is HBM-bound).  The (rows, C_out) <-> (rows/P, P*C_out) reshape
    # is a pure row-major view, so no extra data movement.
    if C_out < 128 and 128 % C_out == 0:
        p = 128 // C_out
    else:
        p = 1

    rows = N * H * W
    rp = -(-rows // p)                               # packed rows needed

    # Packed-row tile: big (default 512 packed = 2048 pixels) to amortize
    # per-step pipeline overhead; cap + round to 16 sublanes for small maps.
    tp = row_tile
    if rp < tp:
        tp = max(16, ((rp + 15) // 16) * 16)
    rp_pad = tp * (-(-rp // tp))
    rows_pad = rp_pad * p

    # bf16 pixel stream (halves HBM read traffic; MXU-native input).
    x = x_nhwc.reshape(rows, C_in).astype(jnp.bfloat16)
    if rows_pad != rows:
        x = jnp.pad(x, ((0, rows_pad - rows), (0, 0)))
    x = x.reshape(rp_pad, p * C_in)

    if p > 1:
        w = jnp.kron(jnp.eye(p, dtype=w.dtype), w)   # (p*C_in, p*C_out)
        bias_l = jnp.tile(bias[None, :], (1, p))     # (1, p*C_out)
    else:
        bias_l = bias[None, :]
    w = w.astype(jnp.bfloat16)
    bias_l = bias_l.astype(jnp.float32)

    grid = (rp_pad // tp,)
    out = pl.pallas_call(
        _reduce_block_kernel,
        out_shape=jax.ShapeDtypeStruct((rp_pad, p * C_out), jnp.float32),
        grid_spec=pltpu.PrefetchScalarGridSpec(
            num_scalar_prefetch=0,
            grid=grid,
            in_specs=[
                pl.BlockSpec((tp, p * C_in), lambda i: (i, 0)),
                pl.BlockSpec((p * C_in, p * C_out), lambda i: (0, 0)),
                pl.BlockSpec((1, p * C_out), lambda i: (0, 0)),
            ],
            out_specs=pl.BlockSpec((tp, p * C_out), lambda i: (i, 0)),
        ),
        compiler_params=pltpu.CompilerParams(
            dimension_semantics=("parallel",)),   # shards rows across TCs (v7x)
    )(x, w, bias_l)

    # (rp_pad, p*C_out) -> drop padding -> (N, H, W, C_out); pure view reshape.
    out = out.reshape(rows_pad, C_out)[:rows]
    return out.reshape(N, H, W, C_out)


# ----------------------------------------------------------------------------
# Synthetic IFN (plain-JAX glue standing in for the pretrained backbone).
# Emits NHWC pyramid feature maps with the configured channels / strides.
# ----------------------------------------------------------------------------
def synthetic_ifn(images_nchw, feat_layers, strides, proj_weights):
    x = jnp.transpose(images_nchw, (0, 2, 3, 1))  # NHWC once, at the top
    results = {}
    for layer, s, wproj in zip(feat_layers, strides, proj_weights):
        pooled = jax.lax.reduce_window(
            x, 0.0, jax.lax.add, (1, s, s, 1), (1, s, s, 1), "VALID") / float(s * s)
        results[layer] = jnp.einsum("nhwc,cd->nhwd", pooled, wproj)  # NHWC
    return results


# ----------------------------------------------------------------------------
# Pyramid2DFFN (eval-mode forward)
# ----------------------------------------------------------------------------
class Pyramid2DFFNPallas:
    def __init__(self, model_cfg, downsample_factor, key):
        self.model_cfg = model_cfg
        self.downsample_factor = downsample_factor
        cr = model_cfg["CHANNEL_REDUCE"]
        self.feat_layers = model_cfg["IFN"]["ARGS"]["feat_extract_layer"]
        self.feat_strides = model_cfg["IFN"]["ARGS"]["feat_strides"]
        self.out_channels = {}
        self.params = []
        keys = jax.random.split(key, len(cr["in_channels"]) + 1)
        # Fixed synthetic-IFN projection weights (3 -> C_in per level).
        ifn_keys = jax.random.split(keys[-1], len(self.feat_layers))
        self.ifn_proj = [
            jax.random.normal(k, (3, c), dtype=jnp.float32) * 0.1
            for k, c in zip(ifn_keys, cr["in_channels"])
        ]
        for idx, c_in in enumerate(cr["in_channels"]):
            c_out = cr["out_channels"][idx]
            assert cr["kernel_size"][idx] == 1 and cr["stride"][idx] == 1, \
                "only 1x1 stride-1 reduce blocks implemented"
            assert not cr["bias"][idx], "conv bias=False per config"
            self.out_channels[self.feat_layers[idx]] = c_out
            wk, gk, bk, mk, vk = jax.random.split(keys[idx], 5)
            conv_w = jax.random.normal(wk, (c_out, c_in, 1, 1), jnp.float32) * 0.05
            gamma = 1.0 + 0.01 * jax.random.normal(gk, (c_out,), jnp.float32)
            beta = 0.01 * jax.random.normal(bk, (c_out,), jnp.float32)
            mean = 0.01 * jax.random.normal(mk, (c_out,), jnp.float32)
            var = jnp.abs(jax.random.normal(vk, (c_out,), jnp.float32)) + 1.0
            self.params.append((conv_w, gamma, beta, mean, var))
        # Jit the whole pipeline so the per-level pallas_calls overlap.
        self._forward_jit = jax.jit(self._forward_impl)

    def get_output_feature_dim(self):
        return self.out_channels

    def _forward_impl(self, images):
        ifn_result = synthetic_ifn(
            images, self.feat_layers, self.feat_strides, self.ifn_proj)
        out = {}
        for idx, layer in enumerate(self.feat_layers):
            conv_w, gamma, beta, mean, var = self.params[idx]
            feat = reduce_block_pallas(
                ifn_result[layer], conv_w, gamma, beta, mean, var)
            # Single layout conversion to keep the PyTorch NCHW output contract.
            out[layer] = jnp.transpose(feat, (0, 3, 1, 2))
        return out

    def forward(self, batch_dict):
        reduced = self._forward_jit(batch_dict["images"])
        for layer in self.feat_layers:
            batch_dict[layer + "_feat2d"] = reduced[layer]
        return batch_dict


# ----------------------------------------------------------------------------
# Pure-JAX reference for the reduce block (same bf16 casting; sanity check).
# ----------------------------------------------------------------------------
def reduce_block_ref(x_nhwc, conv_w, gamma, beta, mean, var, eps=1e-5):
    N, H, W, C_in = x_nhwc.shape
    C_out = conv_w.shape[0]
    inv_std = 1.0 / jnp.sqrt(var + eps)
    scale = gamma * inv_std
    bias = beta - mean * scale
    w = (conv_w.reshape(C_out, C_in).T * scale[None, :]).astype(jnp.bfloat16)
    x = x_nhwc.reshape(-1, C_in).astype(jnp.bfloat16)
    y = jnp.dot(x, w, preferred_element_type=jnp.float32) + bias[None, :]
    y = jnp.maximum(y, 0.0)
    return jnp.transpose(y.reshape(N, H, W, C_out), (0, 3, 1, 2))


if __name__ == "__main__":
    model_cfg = {
        "DISCRETIZE": {"mode": "LID", "num_bins": 80,
                       "depth_min": 2.0, "depth_max": 46.8},
        "OPTIMIZE": True,
        "IFN": {
            "NAME": "SemDeepLabV3",
            "NUM_CLASSES": 21,
            "BACKBONE_NAME": "ResNet101",
            "ARGS": {
                "feat_extract_layer": ["layer1", "layer2"],
                "feat_strides": [4, 8],
                "pretrained_path": None,
            },
        },
        "CHANNEL_REDUCE": {
            "in_channels": [64, 128],
            "out_channels": [32, 32],
            "kernel_size": [1, 1],
            "stride": [1, 1],
            "bias": [False, False],
        },
    }

    key = jax.random.PRNGKey(0)
    pkey, xkey = jax.random.split(key)

    ffn = Pyramid2DFFNPallas(model_cfg, downsample_factor=4, key=pkey)

    # Small input images: (N=2, C=3, H=32, W=32)
    images = jax.random.normal(xkey, (2, 3, 32, 32), dtype=jnp.float32)
    batch_dict = {"images": images}

    batch_dict = ffn.forward(batch_dict)
    feats = [batch_dict[l + "_feat2d"] for l in ffn.feat_layers]
    jax.block_until_ready(feats)

    # Sanity-check the Pallas kernel against a pure-JAX reference.
    ifn_result = synthetic_ifn(images, ffn.feat_layers, ffn.feat_strides,
                               ffn.ifn_proj)
    for idx, layer in enumerate(ffn.feat_layers):
        ref = reduce_block_ref(ifn_result[layer], *ffn.params[idx])
        got = batch_dict[layer + "_feat2d"]
        assert got.shape == ref.shape, (layer, got.shape, ref.shape)
        assert jnp.allclose(got, ref, atol=2e-3, rtol=2e-3), layer

    print("KERNEL_OK")
</pallas_src>

<mosaic_0001>
module attributes {stable_mosaic.version = 11 : i64} {
  func.func @_reduce_block_kernel(%arg0: i32, %arg1: memref<16x512xbf16, #tpu.memory_space<vmem>>, %arg2: memref<512x128xbf16, #tpu.memory_space<vmem>>, %arg3: memref<1x128xf32, #tpu.memory_space<vmem>>, %arg4: memref<16x128xf32, #tpu.memory_space<vmem>>) attributes {dimension_semantics = [#tpu.dimension_semantics<parallel>], iteration_bounds = array<i64: 1>, scalar_prefetch = 0 : i64, scratch_operands = 0 : i64, tpu.core_type = #tpu.core_type<tc>, window_params = [{transform_indices = @transform_0, window_bounds = array<i64: 16, 512>}, {pipeline_mode = #tpu.pipeline_mode<synchronous>, transform_indices = @transform_1, window_bounds = array<i64: 512, 128>}, {pipeline_mode = #tpu.pipeline_mode<synchronous>, transform_indices = @transform_2, window_bounds = array<i64: 1, 128>}, {transform_indices = @transform_3, window_bounds = array<i64: 16, 128>}]} {
    %c0 = arith.constant 0 : index
    %c0_0 = arith.constant 0 : index
    %0 = vector.load %arg1[%c0, %c0_0] : memref<16x512xbf16, #tpu.memory_space<vmem>>, vector<16x512xbf16>
    %c0_1 = arith.constant 0 : index
    %c0_2 = arith.constant 0 : index
    %1 = vector.load %arg2[%c0_1, %c0_2] : memref<512x128xbf16, #tpu.memory_space<vmem>>, vector<512x128xbf16>
    %cst = arith.constant dense<0.000000e+00> : vector<16x128xf32>
    %2 = tpu.matmul %0, %1, %cst {dimension_numbers = #tpu.dot_dimension_numbers<[1], [0], [0], [1], [0, 0, 1, 1], [], []>} : vector<16x512xbf16>, vector<512x128xbf16>, vector<16x128xf32> -> vector<16x128xf32>
    %c0_3 = arith.constant 0 : index
    %c0_4 = arith.constant 0 : index
    %3 = vector.load %arg3[%c0_3, %c0_4] : memref<1x128xf32, #tpu.memory_space<vmem>>, vector<1x128xf32>
    %4 = vector.broadcast %3 : vector<1x128xf32> to vector<16x128xf32>
    %5 = arith.addf %2, %4 : vector<16x128xf32>
    %cst_5 = arith.constant 0.000000e+00 : f32
    %6 = vector.broadcast %cst_5 : f32 to vector<16x128xf32>
    %7 = arith.maximumf %5, %6 : vector<16x128xf32>
    %c0_6 = arith.constant 0 : index
    %c0_7 = arith.constant 0 : index
    %8 = vector.load %arg4[%c0_6, %c0_7] : memref<16x128xf32, #tpu.memory_space<vmem>>, vector<16x128xf32>
    tpu.vector_store %arg4[%c0_6, %c0_7], %7 {strides = array<i32>} : memref<16x128xf32, #tpu.memory_space<vmem>>, vector<16x128xf32>,
    return
  }
  func.func @transform_0(%arg0: i32) -> (i32, i32) {
    %c0_i32 = arith.constant 0 : i32
    %c0_i32_0 = arith.constant 0 : i32
    return %arg0, %c0_i32 : i32, i32
  }
  func.func @transform_1(%arg0: i32) -> (i32, i32) {
    %c0_i32 = arith.constant 0 : i32
    %c0_i32_0 = arith.constant 0 : i32
    %c0_i32_1 = arith.constant 0 : i32
    return %c0_i32, %c0_i32_0 : i32, i32
  }
  func.func @transform_2(%arg0: i32) -> (i32, i32) {
    %c0_i32 = arith.constant 0 : i32
    %c0_i32_0 = arith.constant 0 : i32
    %c0_i32_1 = arith.constant 0 : i32
    return %c0_i32, %c0_i32_0 : i32, i32
  }
  func.func @transform_3(%arg0: i32) -> (i32, i32) {
    %c0_i32 = arith.constant 0 : i32
    %c0_i32_0 = arith.constant 0 : i32
    return %arg0, %c0_i32 : i32, i32
  }
}

module attributes {stable_mosaic.version = 11 : i64} {
  func.func @_reduce_block_kernel(%arg0: i32, %arg1: memref<32x256xbf16, #tpu.memory_space<vmem>>, %arg2: memref<256x128xbf16, #tpu.memory_space<vmem>>, %arg3: memref<1x128xf32, #tpu.memory_space<vmem>>, %arg4: memref<32x128xf32, #tpu.memory_space<vmem>>) attributes {dimension_semantics = [#tpu.dimension_semantics<parallel>], iteration_bounds = array<i64: 1>, scalar_prefetch = 0 : i64, scratch_operands = 0 : i64, tpu.core_type = #tpu.core_type<tc>, window_params = [{transform_indices = @transform_0, window_bounds = array<i64: 32, 256>}, {pipeline_mode = #tpu.pipeline_mode<synchronous>, transform_indices = @transform_1, window_bounds = array<i64: 256, 128>}, {pipeline_mode = #tpu.pipeline_mode<synchronous>, transform_indices = @transform_2, window_bounds = array<i64: 1, 128>}, {transform_indices = @transform_3, window_bounds = array<i64: 32, 128>}]} {
    %c0 = arith.constant 0 : index
    %c0_0 = arith.constant 0 : index
    %0 = vector.load %arg1[%c0, %c0_0] : memref<32x256xbf16, #tpu.memory_space<vmem>>, vector<32x256xbf16>
    %c0_1 = arith.constant 0 : index
    %c0_2 = arith.constant 0 : index
    %1 = vector.load %arg2[%c0_1, %c0_2] : memref<256x128xbf16, #tpu.memory_space<vmem>>, vector<256x128xbf16>
    %cst = arith.constant dense<0.000000e+00> : vector<32x128xf32>
    %2 = tpu.matmul %0, %1, %cst {dimension_numbers = #tpu.dot_dimension_numbers<[1], [0], [0], [1], [0, 0, 1, 1], [], []>} : vector<32x256xbf16>, vector<256x128xbf16>, vector<32x128xf32> -> vector<32x128xf32>
    %c0_3 = arith.constant 0 : index
    %c0_4 = arith.constant 0 : index
    %3 = vector.load %arg3[%c0_3, %c0_4] : memref<1x128xf32, #tpu.memory_space<vmem>>, vector<1x128xf32>
    %4 = vector.broadcast %3 : vector<1x128xf32> to vector<32x128xf32>
    %5 = arith.addf %2, %4 : vector<32x128xf32>
    %cst_5 = arith.constant 0.000000e+00 : f32
    %6 = vector.broadcast %cst_5 : f32 to vector<32x128xf32>
    %7 = arith.maximumf %5, %6 : vector<32x128xf32>
    %c0_6 = arith.constant 0 : index
    %c0_7 = arith.constant 0 : index
    %8 = vector.load %arg4[%c0_6, %c0_7] : memref<32x128xf32, #tpu.memory_space<vmem>>, vector<32x128xf32>
    tpu.vector_store %arg4[%c0_6, %c0_7], %7 {strides = array<i32>} : memref<32x128xf32, #tpu.memory_space<vmem>>, vector<32x128xf32>,
    return
  }
  func.func @transform_0(%arg0: i32) -> (i32, i32) {
    %c0_i32 = arith.constant 0 : i32
    %c0_i32_0 = arith.constant 0 : i32
    return %arg0, %c0_i32 : i32, i32
  }
  func.func @transform_1(%arg0: i32) -> (i32, i32) {
    %c0_i32 = arith.constant 0 : i32
    %c0_i32_0 = arith.constant 0 : i32
    %c0_i32_1 = arith.constant 0 : i32
    return %c0_i32, %c0_i32_0 : i32, i32
  }
  func.func @transform_2(%arg0: i32) -> (i32, i32) {
    %c0_i32 = arith.constant 0 : i32
    %c0_i32_0 = arith.constant 0 : i32
    %c0_i32_1 = arith.constant 0 : i32
    return %c0_i32, %c0_i32_0 : i32, i32
  }
  func.func @transform_3(%arg0: i32) -> (i32, i32) {
    %c0_i32 = arith.constant 0 : i32
    %c0_i32_0 = arith.constant 0 : i32
    return %arg0, %c0_i32 : i32, i32
  }
}

</mosaic_0001>

<llo_original>
// kernel: _forward_impl.3
$region0: #{_forward_impl.3}
  #allocation0 [shape = 'u32[]', space=smem, size = 0x4, offset = 0x4, fixed_abs, tag = 'smem constant byte address 0x4 - core index']
  #allocation1 [shape = 'u32[72,128]{1,0:T(1,128)}', space=vmem, size = 0x9000, scoped, tag = 'internal scratch']
  %s0 = inlined_call_operand.vmem [shape: bf16[16,512], index: 0, kind: input, shape index: {}]
  %s1 = inlined_call_operand.vmem [shape: bf16[512,128], index: 1, kind: input, shape index: {}]
  %s2 = inlined_call_operand.vmem [shape: f32[1,128], index: 2, kind: input, shape index: {}]
  %s3 = inlined_call_operand.vmem [shape: f32[16,128], index: 3, kind: output, shape index: {}]
  %s4 = sld [smem:[#allocation0]]
  $region22: #{_forward_impl.3} parent=0
    _
  %s6 = ssub.s32 1, %s4
  %s7 = scalar_select 0, %s6, %s4
  // Predicated region
  $region2: #{_forward_impl.3} parent=0 // pred_check
    _
  $region3: #{_forward_impl.3} parent=0 // pred_check_branch
    %9 = sbr.rel (0) target = $region5
  $region4: #{_forward_impl.3} parent=0 // pred_region
    _
  $region5: #{_forward_impl.3} parent=0 // pred_fallthru
    _
  // Predicated region
  $region6: #{_forward_impl.3} parent=0 // pred_check
    _
  $region7: #{_forward_impl.3} parent=0 // pred_check_branch
    %11 = sbr.rel (0) target = $region9
  $region8: #{_forward_impl.3} parent=0 // pred_region
    _
  $region9: #{_forward_impl.3} parent=0 // pred_fallthru
    _
  // Predicated region
  $region10: #{_forward_impl.3} parent=0 // pred_check
    _
  $region11: #{_forward_impl.3} parent=0 // pred_check_branch
    %13 = sbr.rel (0) target = $region13
  $region12: #{_forward_impl.3} parent=0 // pred_region
    _
  $region13: #{_forward_impl.3} parent=0 // pred_fallthru
    _
  %v14 = vld [vmem:[%s0] sm:$0xff]
  %v15 = vld [vmem:[%s0 + $0x8] sm:$0xff]
  %v16 = vld [vmem:[%s0 + $0x10] sm:$0xff]
  %v17 = vld [vmem:[%s0 + $0x18] sm:$0xff]
  %v18 = vld [vmem:[%s1] sm:$0xf]
  %v19 = vld [vmem:[%s1 + $0x4] sm:$0xf]
  %v20 = vld [vmem:[%s1 + $0x8] sm:$0xf]
  %v21 = vld [vmem:[%s1 + $0xc] sm:$0xf]
  %v22 = vld [vmem:[%s1 + $0x10] sm:$0xf]
  %v23 = vld [vmem:[%s1 + $0x14] sm:$0xf]
  %v24 = vld [vmem:[%s1 + $0x18] sm:$0xf]
  %v25 = vld [vmem:[%s1 + $0x1c] sm:$0xf]
  %v26 = vld [vmem:[%s1 + $0x20] sm:$0xf]
  %v27 = vld [vmem:[%s1 + $0x24] sm:$0xf]
  %v28 = vld [vmem:[%s1 + $0x28] sm:$0xf]
  %v29 = vld [vmem:[%s1 + $0x2c] sm:$0xf]
  %v30 = vld [vmem:[%s1 + $0x30] sm:$0xf]
  %v31 = vld [vmem:[%s1 + $0x34] sm:$0xf]
  %v32 = vld [vmem:[%s1 + $0x38] sm:$0xf]
  %v33 = vld [vmem:[%s1 + $0x3c] sm:$0xf]
  %v34 = vld [vmem:[%s1 + $0x40] sm:$0xf]
  %v35 = vld [vmem:[%s1 + $0x44] sm:$0xf]
  %v36 = vld [vmem:[%s1 + $0x48] sm:$0xf]
  %v37 = vld [vmem:[%s1 + $0x4c] sm:$0xf]
  %v38 = vld [vmem:[%s1 + $0x50] sm:$0xf]
  %v39 = vld [vmem:[%s1 + $0x54] sm:$0xf]
  %v40 = vld [vmem:[%s1 + $0x58] sm:$0xf]
  %v41 = vld [vmem:[%s1 + $0x5c] sm:$0xf]
  %v42 = vld [vmem:[%s1 + $0x60] sm:$0xf]
  %v43 = vld [vmem:[%s1 + $0x64] sm:$0xf]
  %v44 = vld [vmem:[%s1 + $0x68] sm:$0xf]
  %v45 = vld [vmem:[%s1 + $0x6c] sm:$0xf]
  %v46 = vld [vmem:[%s1 + $0x70] sm:$0xf]
  %v47 = vld [vmem:[%s1 + $0x74] sm:$0xf]
  %v48 = vld [vmem:[%s1 + $0x78] sm:$0xf]
  %v49 = vld [vmem:[%s1 + $0x7c] sm:$0xf]
  %v50 = vld [vmem:[%s1 + $0x80] sm:$0xf]
  %v51 = vld [vmem:[%s1 + $0x84] sm:$0xf]
  %v52 = vld [vmem:[%s1 + $0x88] sm:$0xf]
  %v53 = vld [vmem:[%s1 + $0x8c] sm:$0xf]
  %v54 = vld [vmem:[%s1 + $0x90] sm:$0xf]
  %v55 = vld [vmem:[%s1 + $0x94] sm:$0xf]
  %v56 = vld [vmem:[%s1 + $0x98] sm:$0xf]
  %v57 = vld [vmem:[%s1 + $0x9c] sm:$0xf]
  %v58 = vld [vmem:[%s1 + $0xa0] sm:$0xf]
  %v59 = vld [vmem:[%s1 + $0xa4] sm:$0xf]
  %v60 = vld [vmem:[%s1 + $0xa8] sm:$0xf]
  %v61 = vld [vmem:[%s1 + $0xac] sm:$0xf]
  %v62 = vld [vmem:[%s1 + $0xb0] sm:$0xf]
  %v63 = vld [vmem:[%s1 + $0xb4] sm:$0xf]
  %v64 = vld [vmem:[%s1 + $0xb8] sm:$0xf]
  %v65 = vld [vmem:[%s1 + $0xbc] sm:$0xf]
  %v66 = vld [vmem:[%s1 + $0xc0] sm:$0xf]
  %v67 = vld [vmem:[%s1 + $0xc4] sm:$0xf]
  %v68 = vld [vmem:[%s1 + $0xc8] sm:$0xf]
  %v69 = vld [vmem:[%s1 + $0xcc] sm:$0xf]
  %v70 = vld [vmem:[%s1 + $0xd0] sm:$0xf]
  %v71 = vld [vmem:[%s1 + $0xd4] sm:$0xf]
  %v72 = vld [vmem:[%s1 + $0xd8] sm:$0xf]
  %v73 = vld [vmem:[%s1 + $0xdc] sm:$0xf]
  %v74 = vld [vmem:[%s1 + $0xe0] sm:$0xf]
  %v75 = vld [vmem:[%s1 + $0xe4] sm:$0xf]
  %v76 = vld [vmem:[%s1 + $0xe8] sm:$0xf]
  %v77 = vld [vmem:[%s1 + $0xec] sm:$0xf]
  %v78 = vld [vmem:[%s1 + $0xf0] sm:$0xf]
  %v79 = vld [vmem:[%s1 + $0xf4] sm:$0xf]
  %v80 = vld [vmem:[%s1 + $0xf8] sm:$0xf]
  %v81 = vld [vmem:[%s1 + $0xfc] sm:$0xf]
  %v82 = vld [vmem:[%s2] sm:$0x1]
  %v84 = vperm.slane %v82, 0
  %v90 = vunpack.c.l.b16 %v14
  %v91 = vunpack.c.h.b16 %v14
  %v92 = vunpack.c.l.b16 %v15
  %v93 = vunpack.c.h.b16 %v15
  %v94 = vunpack.c.l.b16 %v16
  %v95 = vunpack.c.h.b16 %v16
  %v96 = vunpack.c.l.b16 %v17
  %v97 = vunpack.c.h.b16 %v17
  %v98 = vpack.c.b16 %v94, %v90
  %v99 = vpack.c.b16 %v95, %v91
  %v100 = vpack.c.b16 %v96, %v92
  %v101 = vpack.c.b16 %v97, %v93
  %v170 = vunpack.c.l.b16 %v18
  %v171 = vunpack.c.l.b16 %v19
  %v172 = vunpack.c.l.b16 %v20
  %v173 = vunpack.c.l.b16 %v21
  %v174 = vunpack.c.l.b16 %v22
  %v175 = vunpack.c.l.b16 %v23
  %v176 = vunpack.c.l.b16 %v24
  %v177 = vunpack.c.l.b16 %v25
  %v178 = vunpack.c.l.b16 %v26
  %v179 = vunpack.c.l.b16 %v27
  %v180 = vunpack.c.l.b16 %v28
  %v181 = vunpack.c.l.b16 %v29
  %v182 = vunpack.c.l.b16 %v30
  %v183 = vunpack.c.l.b16 %v31
  %v184 = vunpack.c.l.b16 %v32
  %v185 = vunpack.c.l.b16 %v33
  %v186 = vunpack.c.l.b16 %v34
  %v187 = vunpack.c.l.b16 %v35
  %v188 = vunpack.c.l.b16 %v36
  %v189 = vunpack.c.l.b16 %v37
  %v190 = vunpack.c.l.b16 %v38
  %v191 = vunpack.c.l.b16 %v39
  %v192 = vunpack.c.l.b16 %v40
  %v193 = vunpack.c.l.b16 %v41
  %v194 = vunpack.c.l.b16 %v42
  %v195 = vunpack.c.l.b16 %v43
  %v196 = vunpack.c.l.b16 %v44
  %v197 = vunpack.c.l.b16 %v45
  %v198 = vunpack.c.l.b16 %v46
  %v199 = vunpack.c.l.b16 %v47
  %v200 = vunpack.c.l.b16 %v48
  %v201 = vunpack.c.l.b16 %v49
  %v202 = vunpack.c.l.b16 %v50
  %v203 = vunpack.c.l.b16 %v51
  %v204 = vunpack.c.l.b16 %v52
  %v205 = vunpack.c.l.b16 %v53
  %v206 = vunpack.c.l.b16 %v54
  %v207 = vunpack.c.l.b16 %v55
  %v208 = vunpack.c.l.b16 %v56
  %v209 = vunpack.c.l.b16 %v57
  %v210 = vunpack.c.l.b16 %v58
  %v211 = vunpack.c.l.b16 %v59
  %v212 = vunpack.c.l.b16 %v60
  %v213 = vunpack.c.l.b16 %v61
  %v214 = vunpack.c.l.b16 %v62
  %v215 = vunpack.c.l.b16 %v63
  %v216 = vunpack.c.l.b16 %v64
  %v217 = vunpack.c.l.b16 %v65
  %v218 = vunpack.c.l.b16 %v66
  %v219 = vunpack.c.l.b16 %v67
  %v220 = vunpack.c.l.b16 %v68
  %v221 = vunpack.c.l.b16 %v69
  %v222 = vunpack.c.l.b16 %v70
  %v223 = vunpack.c.l.b16 %v71
  %v224 = vunpack.c.l.b16 %v72
  %v225 = vunpack.c.l.b16 %v73
  %v226 = vunpack.c.l.b16 %v74
  %v227 = vunpack.c.l.b16 %v75
  %v228 = vunpack.c.l.b16 %v76
  %v229 = vunpack.c.l.b16 %v77
  %v230 = vunpack.c.l.b16 %v78
  %v231 = vunpack.c.l.b16 %v79
  %v232 = vunpack.c.l.b16 %v80
  %v233 = vunpack.c.l.b16 %v81
  %v234 = vpack.c.b16 %v171, %v170
  %v235 = vpack.c.b16 %v173, %v172
  %v236 = vpack.c.b16 %v175, %v174
  %v237 = vpack.c.b16 %v177, %v176
  %v238 = vpack.c.b16 %v179, %v178
  %v239 = vpack.c.b16 %v181, %v180
  %v240 = vpack.c.b16 %v183, %v182
  %v241 = vpack.c.b16 %v185, %v184
  %v242 = vpack.c.b16 %v187, %v186
  %v243 = vpack.c.b16 %v189, %v188
  %v244 = vpack.c.b16 %v191, %v190
  %v245 = vpack.c.b16 %v193, %v192
  %v246 = vpack.c.b16 %v195, %v194
  %v247 = vpack.c.b16 %v197, %v196
  %v248 = vpack.c.b16 %v199, %v198
  %v249 = vpack.c.b16 %v201, %v200
  %v250 = vpack.c.b16 %v203, %v202
  %v251 = vpack.c.b16 %v205, %v204
  %v252 = vpack.c.b16 %v207, %v206
  %v253 = vpack.c.b16 %v209, %v208
  %v254 = vpack.c.b16 %v211, %v210
  %v255 = vpack.c.b16 %v213, %v212
  %v256 = vpack.c.b16 %v215, %v214
  %v257 = vpack.c.b16 %v217, %v216
  %v258 = vpack.c.b16 %v219, %v218
  %v259 = vpack.c.b16 %v221, %v220
  %v260 = vpack.c.b16 %v223, %v222
  %v261 = vpack.c.b16 %v225, %v224
  %v262 = vpack.c.b16 %v227, %v226
  %v263 = vpack.c.b16 %v229, %v228
  %v264 = vpack.c.b16 %v231, %v230
  %v265 = vpack.c.b16 %v233, %v232
  %298 = vmatpush.bf16.msra.mxu0 %v241
  %299 = vmatpush.bf16.msra.mxu0 %v240
  %300 = vmatpush.bf16.msra.mxu0 %v239
  %301 = vmatpush.bf16.msra.mxu0 %v238
  %302 = vmatpush.bf16.msra.mxu0 %v237
  %303 = vmatpush.bf16.msra.mxu0 %v236
  %304 = vmatpush.bf16.msra.mxu0 %v235
  %305 = vmatpush.bf16.msra.mxu0 %v234
  %306 = vmatmul.bf16.gmra.mxu0 %v98
  %v307 = vpop.f32.mrf.mxu0
  %v308 = vadd.f32 %v84, %v307
  %v309 = vpop.f32.mrf.mxu0
  %v310 = vadd.f32 %v84, %v309
  %311 = vdwg.mxu0
  %312 = vmatpush.bf16.msra.mxu0 %v249
  %313 = vmatpush.bf16.msra.mxu0 %v248
  %314 = vmatpush.bf16.msra.mxu0 %v247
  %315 = vmatpush.bf16.msra.mxu0 %v246
  %316 = vmatpush.bf16.msra.mxu0 %v245
  %317 = vmatpush.bf16.msra.mxu0 %v244
  %318 = vmatpush.bf16.msra.mxu0 %v243
  %319 = vmatpush.bf16.msra.mxu0 %v242
  %320 = vmatmul.bf16.gmra.mxu0 %v99
  %v321 = vpop.f32.mrf.mxu0
  %v322 = vadd.f32 %v308, %v321
  %v323 = vpop.f32.mrf.mxu0
  %v324 = vadd.f32 %v310, %v323
  %325 = vdwg.mxu0
  %326 = vmatpush.bf16.msra.mxu0 %v257
  %327 = vmatpush.bf16.msra.mxu0 %v256
  %328 = vmatpush.bf16.msra.mxu0 %v255
  %329 = vmatpush.bf16.msra.mxu0 %v254
  %330 = vmatpush.bf16.msra.mxu0 %v253
  %331 = vmatpush.bf16.msra.mxu0 %v252
  %332 = vmatpush.bf16.msra.mxu0 %v251
  %333 = vmatpush.bf16.msra.mxu0 %v250
  %334 = vmatmul.bf16.gmra.mxu0 %v100
  %v335 = vpop.f32.mrf.mxu0
  %v336 = vadd.f32 %v322, %v335
  %v337 = vpop.f32.mrf.mxu0
  %v338 = vadd.f32 %v324, %v337
  %339 = vdwg.mxu0
  %340 = vmatpush.bf16.msra.mxu0 %v265
  %341 = vmatpush.bf16.msra.mxu0 %v264
  %342 = vmatpush.bf16.msra.mxu0 %v263
  %343 = vmatpush.bf16.msra.mxu0 %v262
  %344 = vmatpush.bf16.msra.mxu0 %v261
  %345 = vmatpush.bf16.msra.mxu0 %v260
  %346 = vmatpush.bf16.msra.mxu0 %v259
  %347 = vmatpush.bf16.msra.mxu0 %v258
  %348 = vmatmul.bf16.gmra.mxu0 %v101
  %v349 = vpop.f32.mrf.mxu0
  %v350 = vadd.f32 %v336, %v349
  %v351 = vpop.f32.mrf.mxu0
  %v352 = vadd.f32 %v338, %v351
  %353 = vdwg.mxu0
  %v354 = vmax.f32 %v350, 0.0
  %v355 = vmax.f32 %v352, 0.0
  %356 = vst [vmem:[%s3] sm:$0xff] %v354
  %357 = vst [vmem:[%s3 + $0x8] sm:$0xff] %v355
  // Predicated region
  $region14: #{_forward_impl.3} parent=0 // pred_check
    _
  $region15: #{_forward_impl.3} parent=0 // pred_check_branch
    %359 = sbr.rel (0) target = $region17
  $region16: #{_forward_impl.3} parent=0 // pred_region
    _
  $region17: #{_forward_impl.3} parent=0 // pred_fallthru
    _
  // Predicated region
  $region18: #{_forward_impl.3} parent=0 // pred_check
    _
  $region19: #{_forward_impl.3} parent=0 // pred_check_branch
    %361 = sbr.rel (0) target = $region21
  $region20: #{_forward_impl.3} parent=0 // pred_region
    _
  $region21: #{_forward_impl.3} parent=0 // pred_fallthru
    _

// kernel: _forward_impl.2
$region0: #{_forward_impl.2}
  #allocation0 [shape = 'u32[]', space=smem, size = 0x4, offset = 0x4, fixed_abs, tag = 'smem constant byte address 0x4 - core index']
  #allocation1 [shape = 'u32[72,128]{1,0:T(1,128)}', space=vmem, size = 0x9000, scoped, tag = 'internal scratch']
  %s0 = inlined_call_operand.vmem [shape: bf16[32,256], index: 0, kind: input, shape index: {}]
  %s1 = inlined_call_operand.vmem [shape: bf16[256,128], index: 1, kind: input, shape index: {}]
  %s2 = inlined_call_operand.vmem [shape: f32[1,128], index: 2, kind: input, shape index: {}]
  %s3 = inlined_call_operand.vmem [shape: f32[32,128], index: 3, kind: output, shape index: {}]
  %s4 = sld [smem:[#allocation0]]
  $region22: #{_forward_impl.2} parent=0
    _
  %s6 = ssub.s32 1, %s4
  %s7 = scalar_select 0, %s6, %s4
  // Predicated region
  $region2: #{_forward_impl.2} parent=0 // pred_check
    _
  $region3: #{_forward_impl.2} parent=0 // pred_check_branch
    %9 = sbr.rel (0) target = $region5
  $region4: #{_forward_impl.2} parent=0 // pred_region
    _
  $region5: #{_forward_impl.2} parent=0 // pred_fallthru
    _
  // Predicated region
  $region6: #{_forward_impl.2} parent=0 // pred_check
    _
  $region7: #{_forward_impl.2} parent=0 // pred_check_branch
    %11 = sbr.rel (0) target = $region9
  $region8: #{_forward_impl.2} parent=0 // pred_region
    _
  $region9: #{_forward_impl.2} parent=0 // pred_fallthru
    _
  // Predicated region
  $region10: #{_forward_impl.2} parent=0 // pred_check
    _
  $region11: #{_forward_impl.2} parent=0 // pred_check_branch
    %13 = sbr.rel (0) target = $region13
  $region12: #{_forward_impl.2} parent=0 // pred_region
    _
  $region13: #{_forward_impl.2} parent=0 // pred_fallthru
    _
  %v14 = vld [vmem:[%s0] sm:$0xff]
  %v15 = vld [vmem:[%s0 + $0x8] sm:$0xff]
  %v16 = vld [vmem:[%s0 + $0x10] sm:$0xff]
  %v17 = vld [vmem:[%s0 + $0x18] sm:$0xff]
  %v18 = vld [vmem:[%s1] sm:$0xf]
  %v19 = vld [vmem:[%s1 + $0x4] sm:$0xf]
  %v20 = vld [vmem:[%s1 + $0x8] sm:$0xf]
  %v21 = vld [vmem:[%s1 + $0xc] sm:$0xf]
  %v22 = vld [vmem:[%s1 + $0x10] sm:$0xf]
  %v23 = vld [vmem:[%s1 + $0x14] sm:$0xf]
  %v24 = vld [vmem:[%s1 + $0x18] sm:$0xf]
  %v25 = vld [vmem:[%s1 + $0x1c] sm:$0xf]
  %v26 = vld [vmem:[%s1 + $0x20] sm:$0xf]
  %v27 = vld [vmem:[%s1 + $0x24] sm:$0xf]
  %v28 = vld [vmem:[%s1 + $0x28] sm:$0xf]
  %v29 = vld [vmem:[%s1 + $0x2c] sm:$0xf]
  %v30 = vld [vmem:[%s1 + $0x30] sm:$0xf]
  %v31 = vld [vmem:[%s1 + $0x34] sm:$0xf]
  %v32 = vld [vmem:[%s1 + $0x38] sm:$0xf]
  %v33 = vld [vmem:[%s1 + $0x3c] sm:$0xf]
  %v34 = vld [vmem:[%s1 + $0x40] sm:$0xf]
  %v35 = vld [vmem:[%s1 + $0x44] sm:$0xf]
  %v36 = vld [vmem:[%s1 + $0x48] sm:$0xf]
  %v37 = vld [vmem:[%s1 + $0x4c] sm:$0xf]
  %v38 = vld [vmem:[%s1 + $0x50] sm:$0xf]
  %v39 = vld [vmem:[%s1 + $0x54] sm:$0xf]
  %v40 = vld [vmem:[%s1 + $0x58] sm:$0xf]
  %v41 = vld [vmem:[%s1 + $0x5c] sm:$0xf]
  %v42 = vld [vmem:[%s1 + $0x60] sm:$0xf]
  %v43 = vld [vmem:[%s1 + $0x64] sm:$0xf]
  %v44 = vld [vmem:[%s1 + $0x68] sm:$0xf]
  %v45 = vld [vmem:[%s1 + $0x6c] sm:$0xf]
  %v46 = vld [vmem:[%s1 + $0x70] sm:$0xf]
  %v47 = vld [vmem:[%s1 + $0x74] sm:$0xf]
  %v48 = vld [vmem:[%s1 + $0x78] sm:$0xf]
  %v49 = vld [vmem:[%s1 + $0x7c] sm:$0xf]
  %v50 = vld [vmem:[%s2] sm:$0x1]
  %v52 = vperm.slane %v50, 0
  %v58 = vunpack.c.l.b16 %v14
  %v59 = vunpack.c.h.b16 %v14
  %v60 = vunpack.c.l.b16 %v15
  %v61 = vunpack.c.h.b16 %v15
  %v62 = vunpack.c.l.b16 %v16
  %v63 = vunpack.c.h.b16 %v16
  %v64 = vunpack.c.l.b16 %v17
  %v65 = vunpack.c.h.b16 %v17
  %v66 = vpack.c.b16 %v60, %v58
  %v67 = vpack.c.b16 %v61, %v59
  %v68 = vpack.c.b16 %v64, %v62
  %v69 = vpack.c.b16 %v65, %v63
  %v106 = vunpack.c.l.b16 %v18
  %v107 = vunpack.c.l.b16 %v19
  %v108 = vunpack.c.l.b16 %v20
  %v109 = vunpack.c.l.b16 %v21
  %v110 = vunpack.c.l.b16 %v22
  %v111 = vunpack.c.l.b16 %v23
  %v112 = vunpack.c.l.b16 %v24
  %v113 = vunpack.c.l.b16 %v25
  %v114 = vunpack.c.l.b16 %v26
  %v115 = vunpack.c.l.b16 %v27
  %v116 = vunpack.c.l.b16 %v28
  %v117 = vunpack.c.l.b16 %v29
  %v118 = vunpack.c.l.b16 %v30
  %v119 = vunpack.c.l.b16 %v31
  %v120 = vunpack.c.l.b16 %v32
  %v121 = vunpack.c.l.b16 %v33
  %v122 = vunpack.c.l.b16 %v34
  %v123 = vunpack.c.l.b16 %v35
  %v124 = vunpack.c.l.b16 %v36
  %v125 = vunpack.c.l.b16 %v37
  %v126 = vunpack.c.l.b16 %v38
  %v127 = vunpack.c.l.b16 %v39
  %v128 = vunpack.c.l.b16 %v40
  %v129 = vunpack.c.l.b16 %v41
  %v130 = vunpack.c.l.b16 %v42
  %v131 = vunpack.c.l.b16 %v43
  %v132 = vunpack.c.l.b16 %v44
  %v133 = vunpack.c.l.b16 %v45
  %v134 = vunpack.c.l.b16 %v46
  %v135 = vunpack.c.l.b16 %v47
  %v136 = vunpack.c.l.b16 %v48
  %v137 = vunpack.c.l.b16 %v49
  %v138 = vpack.c.b16 %v107, %v106
  %v139 = vpack.c.b16 %v109, %v108
  %v140 = vpack.c.b16 %v111, %v110
  %v141 = vpack.c.b16 %v113, %v112
  %v142 = vpack.c.b16 %v115, %v114
  %v143 = vpack.c.b16 %v117, %v116
  %v144 = vpack.c.b16 %v119, %v118
  %v145 = vpack.c.b16 %v121, %v120
  %v146 = vpack.c.b16 %v123, %v122
  %v147 = vpack.c.b16 %v125, %v124
  %v148 = vpack.c.b16 %v127, %v126
  %v149 = vpack.c.b16 %v129, %v128
  %v150 = vpack.c.b16 %v131, %v130
  %v151 = vpack.c.b16 %v133, %v132
  %v152 = vpack.c.b16 %v135, %v134
  %v153 = vpack.c.b16 %v137, %v136
  %170 = vmatpush.bf16.msra.mxu0 %v145
  %171 = vmatpush.bf16.msra.mxu0 %v144
  %172 = vmatpush.bf16.msra.mxu0 %v143
  %173 = vmatpush.bf16.msra.mxu0 %v142
  %174 = vmatpush.bf16.msra.mxu0 %v141
  %175 = vmatpush.bf16.msra.mxu0 %v140
  %176 = vmatpush.bf16.msra.mxu0 %v139
  %177 = vmatpush.bf16.msra.mxu0 %v138
  %178 = vmatmul.bf16.gmra.mxu0 %v66
  %v179 = vpop.f32.mrf.mxu0
  %v180 = vadd.f32 %v52, %v179
  %v181 = vpop.f32.mrf.mxu0
  %v182 = vadd.f32 %v52, %v181
  %183 = vmatmul.bf16.gmra.mxu0 %v68
  %v184 = vpop.f32.mrf.mxu0
  %v185 = vadd.f32 %v52, %v184
  %v186 = vpop.f32.mrf.mxu0
  %v187 = vadd.f32 %v52, %v186
  %188 = vdwg.mxu0
  %189 = vmatpush.bf16.msra.mxu0 %v153
  %190 = vmatpush.bf16.msra.mxu0 %v152
  %191 = vmatpush.bf16.msra.mxu0 %v151
  %192 = vmatpush.bf16.msra.mxu0 %v150
  %193 = vmatpush.bf16.msra.mxu0 %v149
  %194 = vmatpush.bf16.msra.mxu0 %v148
  %195 = vmatpush.bf16.msra.mxu0 %v147
  %196 = vmatpush.bf16.msra.mxu0 %v146
  %197 = vmatmul.bf16.gmra.mxu0 %v67
  %v198 = vpop.f32.mrf.mxu0
  %v199 = vadd.f32 %v180, %v198
  %v200 = vpop.f32.mrf.mxu0
  %v201 = vadd.f32 %v182, %v200
  %202 = vmatmul.bf16.gmra.mxu0 %v69
  %v203 = vpop.f32.mrf.mxu0
  %v204 = vadd.f32 %v185, %v203
  %v205 = vpop.f32.mrf.mxu0
  %v206 = vadd.f32 %v187, %v205
  %207 = vdwg.mxu0
  %v208 = vmax.f32 %v199, 0.0
  %v209 = vmax.f32 %v201, 0.0
  %v210 = vmax.f32 %v204, 0.0
  %v211 = vmax.f32 %v206, 0.0
  %212 = vst [vmem:[%s3] sm:$0xff] %v208
  %213 = vst [vmem:[%s3 + $0x8] sm:$0xff] %v209
  %214 = vst [vmem:[%s3 + $0x10] sm:$0xff] %v210
  %215 = vst [vmem:[%s3 + $0x18] sm:$0xff] %v211
  // Predicated region
  $region14: #{_forward_impl.2} parent=0 // pred_check
    _
  $region15: #{_forward_impl.2} parent=0 // pred_check_branch
    %217 = sbr.rel (0) target = $region17
  $region16: #{_forward_impl.2} parent=0 // pred_region
    _
  $region17: #{_forward_impl.2} parent=0 // pred_fallthru
    _
  // Predicated region
  $region18: #{_forward_impl.2} parent=0 // pred_check
    _
  $region19: #{_forward_impl.2} parent=0 // pred_check_branch
    %219 = sbr.rel (0) target = $region21
  $region20: #{_forward_impl.2} parent=0 // pred_region
    _
  $region21: #{_forward_impl.2} parent=0 // pred_fallthru
    _

</llo_original>
